<compile_context>
chip_gen: v7x
topology: tpu7x:2x2x1
jax: 0.10.0
libtpu: 0.0.40
codegen_flags: <defaults>
</compile_context>

<pallas_src>
import jax
import jax.numpy as jnp
from jax.experimental import pallas as pl
from jax.experimental.pallas import tpu as pltpu
from jax.scipy import linalg as jsp_linalg

_SUBLANE = 8  # sublane width (second-to-last dim tiling unit)


def _round_up(x, m):
    return ((x + m - 1) // m) * m


def _pick_tile_n(n_rows):
    """Row-tile size: multiple of 8, and for large batches chosen so that the
    number of grid steps is EVEN (balanced megacore split on v7x)."""
    n8 = _round_up(n_rows, _SUBLANE)
    if n8 <= 256:
        return n8  # one small tile; splitting tiny work buys nothing
    if n8 <= 1024:
        # two balanced tiles -> both v7x TensorCores get work
        return _round_up(pl.cdiv(n_rows, 2), _SUBLANE)
    # big batches: largest tile in the sweep that yields an even step count
    for t in (512, 256, 128):
        if pl.cdiv(n_rows, t) % 2 == 0:
            return t
    return 512


def _linear_kernel(x_ref, wt_ref, y_ref):
    # y = x @ W^T (W^T pre-computed in the wrapper); f32 MXU accumulation.
    y_ref[...] = jnp.dot(
        x_ref[...], wt_ref[...], preferred_element_type=jnp.float32
    ).astype(y_ref.dtype)


def _pallas_linear(x, w):
    """Compute x @ w.T with a row-tiled Pallas kernel (no pad/unpad copies)."""
    N, D = x.shape
    tile_n = _pick_tile_n(N)
    steps = pl.cdiv(N, tile_n)

    # Wrapper-side transpose (tiny DxD op, done once per call) so there is no
    # in-kernel .T contending with the MXU push slot.
    wt = w.T.astype(x.dtype)

    itemsize = jnp.dtype(x.dtype).itemsize
    # Real VMEM need: 1x weight (single-buffered) + 2x x tiles + 2x y tiles.
    vmem_need = D * D * itemsize + 4 * tile_n * D * itemsize
    compiler_kwargs = dict(dimension_semantics=("parallel",))
    if vmem_need > (12 << 20):
        # Only raise the scoped-VMEM budget above the conservative default
        # when the working set actually needs it; never the full per-core
        # capacity (v7x has only 64 MiB/TC).
        compiler_kwargs["vmem_limit_bytes"] = min(
            int(vmem_need * 1.25) + (2 << 20), 48 << 20
        )

    return pl.pallas_call(
        _linear_kernel,
        out_shape=jax.ShapeDtypeStruct((N, D), x.dtype),
        grid_spec=pl.GridSpec(
            grid=(steps,),
            in_specs=[
                # Row tiles of x; last dim = full extent D (no lane padding).
                pl.BlockSpec((tile_n, D), lambda i: (i, 0)),
                # W^T stays resident; constant index => single buffer.
                pl.BlockSpec((D, D), lambda i: (0, 0),
                             pipeline_mode=pl.Buffered(1)),
            ],
            out_specs=pl.BlockSpec((tile_n, D), lambda i: (i, 0)),
        ),
        compiler_params=pltpu.CompilerParams(**compiler_kwargs),
    )(x, wt)


def brute_force_layer(x, weight, logpx=None, reverse=False):
    """Pallas implementation of BruteForceLayer.forward."""
    D = x.shape[-1]
    lead = x.shape[:-1]
    x2 = x.reshape(-1, D)

    need_logdet = logpx is not None
    lu = piv = None
    if reverse or need_logdet:
        # One LU factorization serves both the logdet and the applied inverse.
        lu, piv = jsp_linalg.lu_factor(weight.astype(jnp.float32))

    if reverse:
        w_eff = jsp_linalg.lu_solve((lu, piv), jnp.eye(D, dtype=jnp.float32))
        sign = 1.0
    else:
        w_eff = weight
        sign = -1.0

    y = _pallas_linear(x2, w_eff).reshape(*lead, D)

    if logpx is None:
        return y

    logabsdet = jnp.sum(jnp.log(jnp.abs(jnp.diag(lu))))
    logpz = logpx + sign * logabsdet.astype(logpx.dtype)
    return y, logpz


if __name__ == "__main__":
    key = jax.random.PRNGKey(0)
    k1, k2, k3 = jax.random.split(key, 3)

    N, D = 16, 32
    x = jax.random.normal(k1, (N, D), dtype=jnp.float32)
    logpx = jax.random.normal(k2, (N, 1), dtype=jnp.float32)

    # __init__: nn.Parameter(torch.eye(dim)) -> identity init; add a tiny
    # deterministic perturbation so the matmul / logdet paths are non-trivial.
    weight = jnp.eye(D, dtype=jnp.float32) + 0.01 * jax.random.normal(
        k3, (D, D), dtype=jnp.float32
    )

    # forward
    y, logpz = brute_force_layer(x, weight, logpx=logpx, reverse=False)
    jax.block_until_ready((y, logpz))

    # reference (plain JAX)
    y_ref = x @ weight.T
    _, lad = jnp.linalg.slogdet(weight)
    logpz_ref = logpx - lad
    assert jnp.allclose(y, y_ref, atol=1e-5), "forward matmul mismatch"
    assert jnp.allclose(logpz, logpz_ref, atol=1e-5), "forward logdet mismatch"

    # reverse (round-trip)
    x_rec, logpx_rec = brute_force_layer(y, weight, logpx=logpz, reverse=True)
    jax.block_until_ready((x_rec, logpx_rec))
    assert jnp.allclose(x_rec, x, atol=1e-3), "reverse matmul mismatch"
    assert jnp.allclose(logpx_rec, logpx, atol=1e-4), "reverse logdet mismatch"

    # logpx=None path returns just y
    y_only = brute_force_layer(x, weight, logpx=None, reverse=False)
    jax.block_until_ready(y_only)
    assert jnp.allclose(y_only, y_ref, atol=1e-5)

    # larger shape: multi-step grid, ragged last row tile (1500 % 256 != 0)
    # and non-128-multiple feature dim (D=200) -> exercises partial blocks.
    N2, D2 = 1500, 200
    x2 = jax.random.normal(k1, (N2, D2), dtype=jnp.float32)
    w2 = jnp.eye(D2, dtype=jnp.float32) + 0.01 * jax.random.normal(
        k2, (D2, D2), dtype=jnp.float32
    )
    y2 = brute_force_layer(x2, w2, logpx=None, reverse=False)
    jax.block_until_ready(y2)
    assert jnp.allclose(y2, x2 @ w2.T, atol=1e-4), "tiled matmul mismatch"

    print("KERNEL_OK")
</pallas_src>

<mosaic_0001>
module attributes {stable_mosaic.version = 11 : i64} {
  func.func @_linear_kernel(%arg0: i32, %arg1: memref<16x32xf32, #tpu.memory_space<vmem>>, %arg2: memref<32x32xf32, #tpu.memory_space<vmem>>, %arg3: memref<16x32xf32, #tpu.memory_space<vmem>>) attributes {dimension_semantics = [#tpu.dimension_semantics<parallel>], iteration_bounds = array<i64: 1>, scalar_prefetch = 0 : i64, scratch_operands = 0 : i64, tpu.core_type = #tpu.core_type<tc>, window_params = [{transform_indices = @transform_0, window_bounds = array<i64: 16, 32>}, {pipeline_mode = #tpu.pipeline_mode<synchronous>, transform_indices = @transform_1, window_bounds = array<i64: 32, 32>}, {transform_indices = @transform_2, window_bounds = array<i64: 16, 32>}]} {
    %c0 = arith.constant 0 : index
    %c0_0 = arith.constant 0 : index
    %0 = vector.load %arg1[%c0, %c0_0] : memref<16x32xf32, #tpu.memory_space<vmem>>, vector<16x32xf32>
    %c0_1 = arith.constant 0 : index
    %c0_2 = arith.constant 0 : index
    %1 = vector.load %arg2[%c0_1, %c0_2] : memref<32x32xf32, #tpu.memory_space<vmem>>, vector<32x32xf32>
    %cst = arith.constant dense<0.000000e+00> : vector<16x32xf32>
    %2 = tpu.matmul %0, %1, %cst {dimension_numbers = #tpu.dot_dimension_numbers<[1], [0], [0], [1], [0, 0, 1, 1], [], []>} : vector<16x32xf32>, vector<32x32xf32>, vector<16x32xf32> -> vector<16x32xf32>
    %c0_3 = arith.constant 0 : index
    %c0_4 = arith.constant 0 : index
    %3 = vector.load %arg3[%c0_3, %c0_4] : memref<16x32xf32, #tpu.memory_space<vmem>>, vector<16x32xf32>
    tpu.vector_store %arg3[%c0_3, %c0_4], %2 {strides = array<i32>} : memref<16x32xf32, #tpu.memory_space<vmem>>, vector<16x32xf32>,
    return
  }
  func.func @transform_0(%arg0: i32) -> (i32, i32) {
    %c0_i32 = arith.constant 0 : i32
    %c0_i32_0 = arith.constant 0 : i32
    return %arg0, %c0_i32 : i32, i32
  }
  func.func @transform_1(%arg0: i32) -> (i32, i32) {
    %c0_i32 = arith.constant 0 : i32
    %c0_i32_0 = arith.constant 0 : i32
    %c0_i32_1 = arith.constant 0 : i32
    return %c0_i32, %c0_i32_0 : i32, i32
  }
  func.func @transform_2(%arg0: i32) -> (i32, i32) {
    %c0_i32 = arith.constant 0 : i32
    %c0_i32_0 = arith.constant 0 : i32
    return %arg0, %c0_i32 : i32, i32
  }
}

</mosaic_0001>

<llo_original>
// kernel: tpu_custom_call.1
$region0: #{tpu_custom_call.1}
  #allocation0 [shape = 'u32[]', space=smem, size = 0x4, offset = 0x4, fixed_abs, tag = 'smem constant byte address 0x4 - core index']
  #allocation1 [shape = 'u32[144,128]{1,0:T(1,128)}', space=vmem, size = 0x12000, scoped, tag = 'internal scratch']
  %s0 = inlined_call_operand.hbm [shape: f32[16,32], index: 0, kind: input, shape index: {}]
  %s1 = inlined_call_operand.hbm [shape: f32[32,32], index: 1, kind: input, shape index: {}]
  %s2 = inlined_call_operand.hbm [shape: f32[16,32], index: 2, kind: output, shape index: {}]
  %s3 = sld [smem:[#allocation0]]
  $region26: #{tpu_custom_call.1} parent=0
    _
  %s5 = ssub.s32 1, %s3
  %s6 = scalar_select 0, %s5, %s3
  $region1: #{tpu_custom_call.1} parent=0
    #allocation2 [shape = 'u8[8192]{0}', space=vmem, size = 0x2000, scoped, tag = 'input window, operand 0, single buffered']
    #allocation3 [shape = 's32[1]{0}', space=sflag, size = 0x4, scoped, tag = 'scoped memory for tpu_custom_call.1']
    #allocation4 [shape = 's32[1]{0}', space=sflag, size = 0x4, scoped, tag = 'scoped memory for tpu_custom_call.1']
    #allocation5 [shape = 'u8[16384]{0}', space=vmem, size = 0x4000, scoped, tag = 'input window, operand 1, single buffered']
    #allocation6 [shape = 's32[1]{0}', space=sflag, size = 0x4, scoped, tag = 'scoped memory for tpu_custom_call.1']
    #allocation7 [shape = 'u8[8192]{0}', space=vmem, size = 0x2000, scoped, tag = 'output window, operand 0, single buffered']
    %7 = vsyncpa [#allocation3], 0
    %8 = vsyncpa [#allocation6], 0
    %9 = vsyncpa [#allocation4], 0
    // Predicated region
    $region2: #{tpu_custom_call.1} parent=1 // pred_check
      _
    $region3: #{tpu_custom_call.1} parent=1 // pred_check_branch
      %11 = sbr.rel (0) target = $region5
    $region4: #{tpu_custom_call.1} parent=1 // pred_region
      %s13 = ssub.s32 256, 256
      %14 = vsyncadd [#allocation3], %s13
      %s15 = sshll.u32 [#allocation2], 4
      %s16 = int_to_ptr.vmem [resolvable:$true] %s15
      %21 = dma.hbm_to_vmem [thread:$0]  %s0, 256, %s16, [#allocation3], 128, 128, 8
    $region5: #{tpu_custom_call.1} parent=1 // pred_fallthru
      _
    // Predicated region
    $region6: #{tpu_custom_call.1} parent=1 // pred_check
      _
    $region7: #{tpu_custom_call.1} parent=1 // pred_check_branch
      %23 = sbr.rel (0) target = $region9
    $region8: #{tpu_custom_call.1} parent=1 // pred_region
      %s25 = ssub.s32 512, 512
      %26 = vsyncadd [#allocation6], %s25
      %s27 = sshll.u32 [#allocation5], 4
      %s28 = int_to_ptr.vmem [resolvable:$true] %s27
      %33 = dma.hbm_to_vmem [thread:$0]  %s1, 512, %s28, [#allocation6], 128, 128, 8
    $region9: #{tpu_custom_call.1} parent=1 // pred_fallthru
      _
    // Predicated region
    $region10: #{tpu_custom_call.1} parent=1 // pred_check
      _
    $region11: #{tpu_custom_call.1} parent=1 // pred_check_branch
      %35 = sbr.rel (0) target = $region13
    $region12: #{tpu_custom_call.1} parent=1 // pred_region
      %36 = dma.done [#allocation3], 256
    $region13: #{tpu_custom_call.1} parent=1 // pred_fallthru
      _
    // Predicated region
    $region14: #{tpu_custom_call.1} parent=1 // pred_check
      _
    $region15: #{tpu_custom_call.1} parent=1 // pred_check_branch
      %38 = sbr.rel (0) target = $region17
    $region16: #{tpu_custom_call.1} parent=1 // pred_region
      %39 = dma.done [#allocation6], 512
    $region17: #{tpu_custom_call.1} parent=1 // pred_fallthru
      _
    %v40 = vld [vmem:[#allocation2] sm:$0xff]
    %v41 = vld [vmem:[#allocation2 + $0x8] sm:$0xff]
    %v42 = vld [vmem:[#allocation5] sm:$0xff]
    %v43 = vld [vmem:[#allocation5 + $0x8] sm:$0xff]
    %v44 = vld [vmem:[#allocation5 + $0x10] sm:$0xff]
    %v45 = vld [vmem:[#allocation5 + $0x18] sm:$0xff]
    %vm46 = vcmask 261120
    %v48 = vsel %vm46, %v40, 0
    %v51 = vsel %vm46, %v41, 0
    %53 = vmatprep.subr.mxu0 0.0
    %54 = vmatpush1.msra.mxu0 %v42
    %55 = vmatprep.subr.mxu0 0.0
    %56 = vmatpush1.msra.mxu0 %v43
    %57 = vmatprep.subr.mxu0 0.0
    %58 = vmatpush1.msra.mxu0 %v44
    %59 = vmatprep.subr.mxu0 0.0
    %60 = vmatpush1.msra.mxu0 %v45
    %61 = vmatprep.subr.mxu0 0.0
    %62 = vmatpush1.msra.mxu0 0.0
    %63 = vmatprep.subr.mxu0 0.0
    %64 = vmatpush1.msra.mxu0 0.0
    %65 = vmatprep.subr.mxu0 0.0
    %66 = vmatpush1.msra.mxu0 0.0
    %67 = vmatprep.subr.mxu0 0.0
    %68 = vmatpush1.msra.mxu0 0.0
    %69 = vmatprep.subr.mxu0 0.0
    %70 = vmatpush1.msra.mxu0 0.0
    %71 = vmatprep.subr.mxu0 0.0
    %72 = vmatpush1.msra.mxu0 0.0
    %73 = vmatprep.subr.mxu0 0.0
    %74 = vmatpush1.msra.mxu0 0.0
    %75 = vmatprep.subr.mxu0 0.0
    %76 = vmatpush1.msra.mxu0 0.0
    %77 = vmatprep.subr.mxu0 0.0
    %78 = vmatpush1.msra.mxu0 0.0
    %79 = vmatprep.subr.mxu0 0.0
    %80 = vmatpush1.msra.mxu0 0.0
    %81 = vmatprep.subr.mxu0 0.0
    %82 = vmatpush1.msra.mxu0 0.0
    %83 = vmatprep.subr.mxu0 0.0
    %84 = vmatpush1.msra.mxu0 0.0
    %85 = vmatprep.subr.mxu0 0.0
    %86 = vmatpush1.msra.mxu0 0.0
    %87 = vmatprep.subr.mxu0 0.0
    %88 = vmatpush1.msra.mxu0 0.0
    %89 = vmatprep.subr.mxu0 0.0
    %90 = vmatpush1.msra.mxu0 0.0
    %91 = vmatprep.subr.mxu0 0.0
    %92 = vmatpush1.msra.mxu0 0.0
    %93 = vmatprep.subr.mxu0 0.0
    %94 = vmatpush1.msra.mxu0 0.0
    %95 = vmatprep.subr.mxu0 0.0
    %96 = vmatpush1.msra.mxu0 0.0
    %97 = vmatprep.subr.mxu0 0.0
    %98 = vmatpush1.msra.mxu0 0.0
    %99 = vmatprep.subr.mxu0 0.0
    %100 = vmatpush1.msra.mxu0 0.0
    %101 = vmatprep.subr.mxu0 0.0
    %102 = vmatpush1.msra.mxu0 0.0
    %103 = vmatprep.subr.mxu0 0.0
    %104 = vmatpush1.msra.mxu0 0.0
    %105 = vmatprep.subr.mxu0 0.0
    %106 = vmatpush1.msra.mxu0 0.0
    %107 = vmatprep.subr.mxu0 0.0
    %108 = vmatpush1.msra.mxu0 0.0
    %109 = vmatprep.subr.mxu0 0.0
    %110 = vmatpush1.msra.mxu0 0.0
    %111 = vmatprep.subr.mxu0 0.0
    %112 = vmatpush1.msra.mxu0 0.0
    %113 = vmatprep.subr.mxu0 0.0
    %114 = vmatpush1.msra.mxu0 0.0
    %115 = vmatprep.subr.mxu0 0.0
    %116 = vmatpush1.msra.mxu0 0.0
    %117 = vmatprep.mubr.f32.mxu0 0.0
    %118 = vmatmul.mubr.f32.gmra.mrb[0].mxu0 %v48
    %v119 = vpop.f32.mrb[0].mxu0
    %v120 = vadd.f32 0.0, %v119
    %v121 = vpop.f32.mrb[0].mxu0
    %122 = vmatprep.mubr.f32.mxu0 0.0
    %123 = vmatmul.mubr.f32.gmra.mrb[0].mxu0 %v51
    %v124 = vpop.f32.mrb[0].mxu0
    %v125 = vadd.f32 0.0, %v124
    %v126 = vpop.f32.mrb[0].mxu0
    %127 = vdwg.mxu0
    %128 = vst.msk [vmem:[#allocation7] sm:$0xff] %vm46, %v120
    %129 = vst.msk [vmem:[#allocation7 + $0x8] sm:$0xff] %vm46, %v125
    // Predicated region
    $region18: #{tpu_custom_call.1} parent=1 // pred_check
      _
    $region19: #{tpu_custom_call.1} parent=1 // pred_check_branch
      %131 = sbr.rel (0) target = $region21
    $region20: #{tpu_custom_call.1} parent=1 // pred_region
      %s133 = ssub.s32 256, 256
      %134 = vsyncadd [#allocation4], %s133
      %s135 = sshll.u32 [#allocation7], 4
      %s136 = int_to_ptr.vmem [resolvable:$true] %s135
      %141 = dma.vmem_to_hbm [thread:$0]  %s136, 256, %s2, [#allocation4], 128, 128, 8
    $region21: #{tpu_custom_call.1} parent=1 // pred_fallthru
      _
    // Predicated region
    $region22: #{tpu_custom_call.1} parent=1 // pred_check
      _
    $region23: #{tpu_custom_call.1} parent=1 // pred_check_branch
      %143 = sbr.rel (0) target = $region25
    $region24: #{tpu_custom_call.1} parent=1 // pred_region
      %144 = dma.done [#allocation4], 256
    $region25: #{tpu_custom_call.1} parent=1 // pred_fallthru
      _
    %145 = vsyncpa [#allocation3], 1
    %146 = vsyncpa [#allocation6], 1
    %147 = vsyncpa [#allocation4], 1

</llo_original>
